<compile_context>
chip_gen: v5e
topology: v5e:2x2
jax: 0.10.0
libtpu: 0.0.40
codegen_flags: <defaults>
</compile_context>

<pallas_src>
import jax
import jax.numpy as jnp
from jax.experimental import pallas as pl
from jax.experimental.pallas import tpu as pltpu

HIDDEN = 16


def _discriminator_kernel(w1_ref, b1_ref, w2_ref, b2_ref, x_ref, o_ref):
    # w1/b1/w2: (16,) f32 in SMEM; b2: (1,) f32 in SMEM.
    # x, o: (TILE_ROWS, LANE) f32 in VMEM (lane-dense batch).
    x = x_ref[...]
    z = jnp.zeros_like(x)
    # Unrolled 16-unit MLP on the VPU (no MXU): fused mul-add-relu-mul-add.
    for j in range(HIDDEN):
        h = jnp.maximum(x * w1_ref[j] + b1_ref[j], 0.0)
        z = z + h * w2_ref[j]
    # Sigmoid (exp lands on the EUP slot; kernel stays mem-bound).
    o_ref[...] = jax.nn.sigmoid(z + b2_ref[0]).astype(o_ref.dtype)


def discriminator_forward(x, weight1, bias1, weight2, bias2,
                          *, lane=1024, max_tile_rows=512):
    """Forward pass equivalent to the PyTorch Discriminator.

    x: (N, 1) f32.  weight1: (16, 1), bias1: (16,), weight2: (1, 16), bias2: (1,).
    Returns (N, 1) f32.
    """
    n = x.shape[0]

    # Flatten the tiny parameter tensors for SMEM scalar reads.
    w1 = weight1.reshape(-1).astype(jnp.float32)   # (16,)  = W1[:, 0]
    b1 = bias1.reshape(-1).astype(jnp.float32)     # (16,)
    w2 = weight2.reshape(-1).astype(jnp.float32)   # (16,)  = W2[0, :]
    b2 = bias2.reshape(-1).astype(jnp.float32)     # (1,)

    # Lane-dense layout: (N, 1) -> padded (rows_padded, lane).
    x_flat = x.reshape(-1).astype(jnp.float32)
    rows = pl.cdiv(n, lane)
    tile_rows = min(max_tile_rows, ((rows + 7) // 8) * 8)      # multiple of 8
    rows_padded = ((rows + tile_rows - 1) // tile_rows) * tile_rows
    total = rows_padded * lane
    x2 = jnp.pad(x_flat, (0, total - n)).reshape(rows_padded, lane)

    grid = (rows_padded // tile_rows,)
    out2 = pl.pallas_call(
        _discriminator_kernel,
        out_shape=jax.ShapeDtypeStruct((rows_padded, lane), jnp.float32),
        grid=grid,
        in_specs=[
            pl.BlockSpec(memory_space=pltpu.MemorySpace.SMEM),  # w1 (16,)
            pl.BlockSpec(memory_space=pltpu.MemorySpace.SMEM),  # b1 (16,)
            pl.BlockSpec(memory_space=pltpu.MemorySpace.SMEM),  # w2 (16,)
            pl.BlockSpec(memory_space=pltpu.MemorySpace.SMEM),  # b2 (1,)
            pl.BlockSpec((tile_rows, lane), lambda i: (i, 0)),  # x tiles
        ],
        out_specs=pl.BlockSpec((tile_rows, lane), lambda i: (i, 0)),
        compiler_params=pltpu.CompilerParams(
            dimension_semantics=("parallel",)),
    )(w1, b1, w2, b2, x2)

    return out2.reshape(-1)[:n].reshape(n, 1)


def init_params(key):
    """Deterministic init mimicking PyTorch nn.Linear defaults (U[-1/sqrt(fan_in), +])."""
    k1, k2, k3, k4 = jax.random.split(key, 4)
    # Linear(1, 16): weight (16, 1), bias (16,)
    bound1 = 1.0  # 1/sqrt(1)
    weight1 = jax.random.uniform(k1, (HIDDEN, 1), jnp.float32, -bound1, bound1)
    bias1 = jax.random.uniform(k2, (HIDDEN,), jnp.float32, -bound1, bound1)
    # Linear(16, 1): weight (1, 16), bias (1,)
    bound2 = 1.0 / jnp.sqrt(16.0)
    weight2 = jax.random.uniform(k3, (1, HIDDEN), jnp.float32, -bound2, bound2)
    bias2 = jax.random.uniform(k4, (1,), jnp.float32, -bound2, bound2)
    return weight1, bias1, weight2, bias2


def reference_forward(x, weight1, bias1, weight2, bias2):
    h = jnp.maximum(x @ weight1.T + bias1, 0.0)
    return jax.nn.sigmoid(h @ weight2.T + bias2)


if __name__ == "__main__":
    key = jax.random.PRNGKey(0)
    kx, kx2, kp = jax.random.split(key, 3)

    weight1, bias1, weight2, bias2 = init_params(kp)

    # Small batch, shape consistent with the module: (N, 1).
    batch = 8
    x = jax.random.normal(kx, (batch, 1), jnp.float32)
    out = discriminator_forward(x, weight1, bias1, weight2, bias2)
    out = jax.block_until_ready(out)
    ref = reference_forward(x, weight1, bias1, weight2, bias2)
    assert out.shape == (batch, 1)
    assert jnp.allclose(out, ref, atol=1e-5, rtol=1e-5)

    # Non-multiple-of-tile batch to exercise the pad/slice path.
    batch2 = 300
    xb = jax.random.normal(kx2, (batch2, 1), jnp.float32)
    out2 = jax.block_until_ready(
        discriminator_forward(xb, weight1, bias1, weight2, bias2))
    ref2 = reference_forward(xb, weight1, bias1, weight2, bias2)
    assert out2.shape == (batch2, 1)
    assert jnp.allclose(out2, ref2, atol=1e-5, rtol=1e-5)

    print("KERNEL_OK")
</pallas_src>

<mosaic_0001>
module attributes {stable_mosaic.version = 11 : i64} {
  func.func @_discriminator_kernel(%arg0: i32, %arg1: memref<16xf32, #tpu.memory_space<smem>>, %arg2: memref<16xf32, #tpu.memory_space<smem>>, %arg3: memref<16xf32, #tpu.memory_space<smem>>, %arg4: memref<1xf32, #tpu.memory_space<smem>>, %arg5: memref<8x1024xf32, #tpu.memory_space<vmem>>, %arg6: memref<8x1024xf32, #tpu.memory_space<vmem>>) attributes {dimension_semantics = [#tpu.dimension_semantics<parallel>], iteration_bounds = array<i64: 1>, scalar_prefetch = 0 : i64, scratch_operands = 0 : i64, tpu.core_type = #tpu.core_type<tc>, window_params = [{transform_indices = @transform_0, window_bounds = array<i64: 16>}, {transform_indices = @transform_1, window_bounds = array<i64: 16>}, {transform_indices = @transform_2, window_bounds = array<i64: 16>}, {transform_indices = @transform_3, window_bounds = array<i64: 1>}, {transform_indices = @transform_4, window_bounds = array<i64: 8, 1024>}, {transform_indices = @transform_5, window_bounds = array<i64: 8, 1024>}]} {
    %c0 = arith.constant 0 : index
    %c0_0 = arith.constant 0 : index
    %0 = vector.load %arg5[%c0, %c0_0] : memref<8x1024xf32, #tpu.memory_space<vmem>>, vector<8x1024xf32>
    %cst = arith.constant 0.000000e+00 : f32
    %1 = vector.broadcast %cst : f32 to vector<8x1024xf32>
    %c0_1 = arith.constant 0 : index
    %2 = memref.load %arg1[%c0_1] : memref<16xf32, #tpu.memory_space<smem>>
    %3 = vector.broadcast %2 : f32 to vector<8x1024xf32>
    %4 = arith.mulf %0, %3 : vector<8x1024xf32>
    %c0_2 = arith.constant 0 : index
    %5 = memref.load %arg2[%c0_2] : memref<16xf32, #tpu.memory_space<smem>>
    %6 = vector.broadcast %5 : f32 to vector<8x1024xf32>
    %7 = arith.addf %4, %6 : vector<8x1024xf32>
    %cst_3 = arith.constant 0.000000e+00 : f32
    %8 = vector.broadcast %cst_3 : f32 to vector<8x1024xf32>
    %9 = arith.maximumf %7, %8 : vector<8x1024xf32>
    %c0_4 = arith.constant 0 : index
    %10 = memref.load %arg3[%c0_4] : memref<16xf32, #tpu.memory_space<smem>>
    %11 = vector.broadcast %10 : f32 to vector<8x1024xf32>
    %12 = arith.mulf %9, %11 : vector<8x1024xf32>
    %13 = arith.addf %1, %12 : vector<8x1024xf32>
    %c1 = arith.constant 1 : index
    %14 = memref.load %arg1[%c1] : memref<16xf32, #tpu.memory_space<smem>>
    %15 = vector.broadcast %14 : f32 to vector<8x1024xf32>
    %16 = arith.mulf %0, %15 : vector<8x1024xf32>
    %c1_5 = arith.constant 1 : index
    %17 = memref.load %arg2[%c1_5] : memref<16xf32, #tpu.memory_space<smem>>
    %18 = vector.broadcast %17 : f32 to vector<8x1024xf32>
    %19 = arith.addf %16, %18 : vector<8x1024xf32>
    %cst_6 = arith.constant 0.000000e+00 : f32
    %20 = vector.broadcast %cst_6 : f32 to vector<8x1024xf32>
    %21 = arith.maximumf %19, %20 : vector<8x1024xf32>
    %c1_7 = arith.constant 1 : index
    %22 = memref.load %arg3[%c1_7] : memref<16xf32, #tpu.memory_space<smem>>
    %23 = vector.broadcast %22 : f32 to vector<8x1024xf32>
    %24 = arith.mulf %21, %23 : vector<8x1024xf32>
    %25 = arith.addf %13, %24 : vector<8x1024xf32>
    %c2 = arith.constant 2 : index
    %26 = memref.load %arg1[%c2] : memref<16xf32, #tpu.memory_space<smem>>
    %27 = vector.broadcast %26 : f32 to vector<8x1024xf32>
    %28 = arith.mulf %0, %27 : vector<8x1024xf32>
    %c2_8 = arith.constant 2 : index
    %29 = memref.load %arg2[%c2_8] : memref<16xf32, #tpu.memory_space<smem>>
    %30 = vector.broadcast %29 : f32 to vector<8x1024xf32>
    %31 = arith.addf %28, %30 : vector<8x1024xf32>
    %cst_9 = arith.constant 0.000000e+00 : f32
    %32 = vector.broadcast %cst_9 : f32 to vector<8x1024xf32>
    %33 = arith.maximumf %31, %32 : vector<8x1024xf32>
    %c2_10 = arith.constant 2 : index
    %34 = memref.load %arg3[%c2_10] : memref<16xf32, #tpu.memory_space<smem>>
    %35 = vector.broadcast %34 : f32 to vector<8x1024xf32>
    %36 = arith.mulf %33, %35 : vector<8x1024xf32>
    %37 = arith.addf %25, %36 : vector<8x1024xf32>
    %c3 = arith.constant 3 : index
    %38 = memref.load %arg1[%c3] : memref<16xf32, #tpu.memory_space<smem>>
    %39 = vector.broadcast %38 : f32 to vector<8x1024xf32>
    %40 = arith.mulf %0, %39 : vector<8x1024xf32>
    %c3_11 = arith.constant 3 : index
    %41 = memref.load %arg2[%c3_11] : memref<16xf32, #tpu.memory_space<smem>>
    %42 = vector.broadcast %41 : f32 to vector<8x1024xf32>
    %43 = arith.addf %40, %42 : vector<8x1024xf32>
    %cst_12 = arith.constant 0.000000e+00 : f32
    %44 = vector.broadcast %cst_12 : f32 to vector<8x1024xf32>
    %45 = arith.maximumf %43, %44 : vector<8x1024xf32>
    %c3_13 = arith.constant 3 : index
    %46 = memref.load %arg3[%c3_13] : memref<16xf32, #tpu.memory_space<smem>>
    %47 = vector.broadcast %46 : f32 to vector<8x1024xf32>
    %48 = arith.mulf %45, %47 : vector<8x1024xf32>
    %49 = arith.addf %37, %48 : vector<8x1024xf32>
    %c4 = arith.constant 4 : index
    %50 = memref.load %arg1[%c4] : memref<16xf32, #tpu.memory_space<smem>>
    %51 = vector.broadcast %50 : f32 to vector<8x1024xf32>
    %52 = arith.mulf %0, %51 : vector<8x1024xf32>
    %c4_14 = arith.constant 4 : index
    %53 = memref.load %arg2[%c4_14] : memref<16xf32, #tpu.memory_space<smem>>
    %54 = vector.broadcast %53 : f32 to vector<8x1024xf32>
    %55 = arith.addf %52, %54 : vector<8x1024xf32>
    %cst_15 = arith.constant 0.000000e+00 : f32
    %56 = vector.broadcast %cst_15 : f32 to vector<8x1024xf32>
    %57 = arith.maximumf %55, %56 : vector<8x1024xf32>
    %c4_16 = arith.constant 4 : index
    %58 = memref.load %arg3[%c4_16] : memref<16xf32, #tpu.memory_space<smem>>
    %59 = vector.broadcast %58 : f32 to vector<8x1024xf32>
    %60 = arith.mulf %57, %59 : vector<8x1024xf32>
    %61 = arith.addf %49, %60 : vector<8x1024xf32>
    %c5 = arith.constant 5 : index
    %62 = memref.load %arg1[%c5] : memref<16xf32, #tpu.memory_space<smem>>
    %63 = vector.broadcast %62 : f32 to vector<8x1024xf32>
    %64 = arith.mulf %0, %63 : vector<8x1024xf32>
    %c5_17 = arith.constant 5 : index
    %65 = memref.load %arg2[%c5_17] : memref<16xf32, #tpu.memory_space<smem>>
    %66 = vector.broadcast %65 : f32 to vector<8x1024xf32>
    %67 = arith.addf %64, %66 : vector<8x1024xf32>
    %cst_18 = arith.constant 0.000000e+00 : f32
    %68 = vector.broadcast %cst_18 : f32 to vector<8x1024xf32>
    %69 = arith.maximumf %67, %68 : vector<8x1024xf32>
    %c5_19 = arith.constant 5 : index
    %70 = memref.load %arg3[%c5_19] : memref<16xf32, #tpu.memory_space<smem>>
    %71 = vector.broadcast %70 : f32 to vector<8x1024xf32>
    %72 = arith.mulf %69, %71 : vector<8x1024xf32>
    %73 = arith.addf %61, %72 : vector<8x1024xf32>
    %c6 = arith.constant 6 : index
    %74 = memref.load %arg1[%c6] : memref<16xf32, #tpu.memory_space<smem>>
    %75 = vector.broadcast %74 : f32 to vector<8x1024xf32>
    %76 = arith.mulf %0, %75 : vector<8x1024xf32>
    %c6_20 = arith.constant 6 : index
    %77 = memref.load %arg2[%c6_20] : memref<16xf32, #tpu.memory_space<smem>>
    %78 = vector.broadcast %77 : f32 to vector<8x1024xf32>
    %79 = arith.addf %76, %78 : vector<8x1024xf32>
    %cst_21 = arith.constant 0.000000e+00 : f32
    %80 = vector.broadcast %cst_21 : f32 to vector<8x1024xf32>
    %81 = arith.maximumf %79, %80 : vector<8x1024xf32>
    %c6_22 = arith.constant 6 : index
    %82 = memref.load %arg3[%c6_22] : memref<16xf32, #tpu.memory_space<smem>>
    %83 = vector.broadcast %82 : f32 to vector<8x1024xf32>
    %84 = arith.mulf %81, %83 : vector<8x1024xf32>
    %85 = arith.addf %73, %84 : vector<8x1024xf32>
    %c7 = arith.constant 7 : index
    %86 = memref.load %arg1[%c7] : memref<16xf32, #tpu.memory_space<smem>>
    %87 = vector.broadcast %86 : f32 to vector<8x1024xf32>
    %88 = arith.mulf %0, %87 : vector<8x1024xf32>
    %c7_23 = arith.constant 7 : index
    %89 = memref.load %arg2[%c7_23] : memref<16xf32, #tpu.memory_space<smem>>
    %90 = vector.broadcast %89 : f32 to vector<8x1024xf32>
    %91 = arith.addf %88, %90 : vector<8x1024xf32>
    %cst_24 = arith.constant 0.000000e+00 : f32
    %92 = vector.broadcast %cst_24 : f32 to vector<8x1024xf32>
    %93 = arith.maximumf %91, %92 : vector<8x1024xf32>
    %c7_25 = arith.constant 7 : index
    %94 = memref.load %arg3[%c7_25] : memref<16xf32, #tpu.memory_space<smem>>
    %95 = vector.broadcast %94 : f32 to vector<8x1024xf32>
    %96 = arith.mulf %93, %95 : vector<8x1024xf32>
    %97 = arith.addf %85, %96 : vector<8x1024xf32>
    %c8 = arith.constant 8 : index
    %98 = memref.load %arg1[%c8] : memref<16xf32, #tpu.memory_space<smem>>
    %99 = vector.broadcast %98 : f32 to vector<8x1024xf32>
    %100 = arith.mulf %0, %99 : vector<8x1024xf32>
    %c8_26 = arith.constant 8 : index
    %101 = memref.load %arg2[%c8_26] : memref<16xf32, #tpu.memory_space<smem>>
    %102 = vector.broadcast %101 : f32 to vector<8x1024xf32>
    %103 = arith.addf %100, %102 : vector<8x1024xf32>
    %cst_27 = arith.constant 0.000000e+00 : f32
    %104 = vector.broadcast %cst_27 : f32 to vector<8x1024xf32>
    %105 = arith.maximumf %103, %104 : vector<8x1024xf32>
    %c8_28 = arith.constant 8 : index
    %106 = memref.load %arg3[%c8_28] : memref<16xf32, #tpu.memory_space<smem>>
    %107 = vector.broadcast %106 : f32 to vector<8x1024xf32>
    %108 = arith.mulf %105, %107 : vector<8x1024xf32>
    %109 = arith.addf %97, %108 : vector<8x1024xf32>
    %c9 = arith.constant 9 : index
    %110 = memref.load %arg1[%c9] : memref<16xf32, #tpu.memory_space<smem>>
    %111 = vector.broadcast %110 : f32 to vector<8x1024xf32>
    %112 = arith.mulf %0, %111 : vector<8x1024xf32>
    %c9_29 = arith.constant 9 : index
    %113 = memref.load %arg2[%c9_29] : memref<16xf32, #tpu.memory_space<smem>>
    %114 = vector.broadcast %113 : f32 to vector<8x1024xf32>
    %115 = arith.addf %112, %114 : vector<8x1024xf32>
    %cst_30 = arith.constant 0.000000e+00 : f32
    %116 = vector.broadcast %cst_30 : f32 to vector<8x1024xf32>
    %117 = arith.maximumf %115, %116 : vector<8x1024xf32>
    %c9_31 = arith.constant 9 : index
    %118 = memref.load %arg3[%c9_31] : memref<16xf32, #tpu.memory_space<smem>>
    %119 = vector.broadcast %118 : f32 to vector<8x1024xf32>
    %120 = arith.mulf %117, %119 : vector<8x1024xf32>
    %121 = arith.addf %109, %120 : vector<8x1024xf32>
    %c10 = arith.constant 10 : index
    %122 = memref.load %arg1[%c10] : memref<16xf32, #tpu.memory_space<smem>>
    %123 = vector.broadcast %122 : f32 to vector<8x1024xf32>
    %124 = arith.mulf %0, %123 : vector<8x1024xf32>
    %c10_32 = arith.constant 10 : index
    %125 = memref.load %arg2[%c10_32] : memref<16xf32, #tpu.memory_space<smem>>
    %126 = vector.broadcast %125 : f32 to vector<8x1024xf32>
    %127 = arith.addf %124, %126 : vector<8x1024xf32>
    %cst_33 = arith.constant 0.000000e+00 : f32
    %128 = vector.broadcast %cst_33 : f32 to vector<8x1024xf32>
    %129 = arith.maximumf %127, %128 : vector<8x1024xf32>
    %c10_34 = arith.constant 10 : index
    %130 = memref.load %arg3[%c10_34] : memref<16xf32, #tpu.memory_space<smem>>
    %131 = vector.broadcast %130 : f32 to vector<8x1024xf32>
    %132 = arith.mulf %129, %131 : vector<8x1024xf32>
    %133 = arith.addf %121, %132 : vector<8x1024xf32>
    %c11 = arith.constant 11 : index
    %134 = memref.load %arg1[%c11] : memref<16xf32, #tpu.memory_space<smem>>
    %135 = vector.broadcast %134 : f32 to vector<8x1024xf32>
    %136 = arith.mulf %0, %135 : vector<8x1024xf32>
    %c11_35 = arith.constant 11 : index
    %137 = memref.load %arg2[%c11_35] : memref<16xf32, #tpu.memory_space<smem>>
    %138 = vector.broadcast %137 : f32 to vector<8x1024xf32>
    %139 = arith.addf %136, %138 : vector<8x1024xf32>
    %cst_36 = arith.constant 0.000000e+00 : f32
    %140 = vector.broadcast %cst_36 : f32 to vector<8x1024xf32>
    %141 = arith.maximumf %139, %140 : vector<8x1024xf32>
    %c11_37 = arith.constant 11 : index
    %142 = memref.load %arg3[%c11_37] : memref<16xf32, #tpu.memory_space<smem>>
    %143 = vector.broadcast %142 : f32 to vector<8x1024xf32>
    %144 = arith.mulf %141, %143 : vector<8x1024xf32>
    %145 = arith.addf %133, %144 : vector<8x1024xf32>
    %c12 = arith.constant 12 : index
    %146 = memref.load %arg1[%c12] : memref<16xf32, #tpu.memory_space<smem>>
    %147 = vector.broadcast %146 : f32 to vector<8x1024xf32>
    %148 = arith.mulf %0, %147 : vector<8x1024xf32>
    %c12_38 = arith.constant 12 : index
    %149 = memref.load %arg2[%c12_38] : memref<16xf32, #tpu.memory_space<smem>>
    %150 = vector.broadcast %149 : f32 to vector<8x1024xf32>
    %151 = arith.addf %148, %150 : vector<8x1024xf32>
    %cst_39 = arith.constant 0.000000e+00 : f32
    %152 = vector.broadcast %cst_39 : f32 to vector<8x1024xf32>
    %153 = arith.maximumf %151, %152 : vector<8x1024xf32>
    %c12_40 = arith.constant 12 : index
    %154 = memref.load %arg3[%c12_40] : memref<16xf32, #tpu.memory_space<smem>>
    %155 = vector.broadcast %154 : f32 to vector<8x1024xf32>
    %156 = arith.mulf %153, %155 : vector<8x1024xf32>
    %157 = arith.addf %145, %156 : vector<8x1024xf32>
    %c13 = arith.constant 13 : index
    %158 = memref.load %arg1[%c13] : memref<16xf32, #tpu.memory_space<smem>>
    %159 = vector.broadcast %158 : f32 to vector<8x1024xf32>
    %160 = arith.mulf %0, %159 : vector<8x1024xf32>
    %c13_41 = arith.constant 13 : index
    %161 = memref.load %arg2[%c13_41] : memref<16xf32, #tpu.memory_space<smem>>
    %162 = vector.broadcast %161 : f32 to vector<8x1024xf32>
    %163 = arith.addf %160, %162 : vector<8x1024xf32>
    %cst_42 = arith.constant 0.000000e+00 : f32
    %164 = vector.broadcast %cst_42 : f32 to vector<8x1024xf32>
    %165 = arith.maximumf %163, %164 : vector<8x1024xf32>
    %c13_43 = arith.constant 13 : index
    %166 = memref.load %arg3[%c13_43] : memref<16xf32, #tpu.memory_space<smem>>
    %167 = vector.broadcast %166 : f32 to vector<8x1024xf32>
    %168 = arith.mulf %165, %167 : vector<8x1024xf32>
    %169 = arith.addf %157, %168 : vector<8x1024xf32>
    %c14 = arith.constant 14 : index
    %170 = memref.load %arg1[%c14] : memref<16xf32, #tpu.memory_space<smem>>
    %171 = vector.broadcast %170 : f32 to vector<8x1024xf32>
    %172 = arith.mulf %0, %171 : vector<8x1024xf32>
    %c14_44 = arith.constant 14 : index
    %173 = memref.load %arg2[%c14_44] : memref<16xf32, #tpu.memory_space<smem>>
    %174 = vector.broadcast %173 : f32 to vector<8x1024xf32>
    %175 = arith.addf %172, %174 : vector<8x1024xf32>
    %cst_45 = arith.constant 0.000000e+00 : f32
    %176 = vector.broadcast %cst_45 : f32 to vector<8x1024xf32>
    %177 = arith.maximumf %175, %176 : vector<8x1024xf32>
    %c14_46 = arith.constant 14 : index
    %178 = memref.load %arg3[%c14_46] : memref<16xf32, #tpu.memory_space<smem>>
    %179 = vector.broadcast %178 : f32 to vector<8x1024xf32>
    %180 = arith.mulf %177, %179 : vector<8x1024xf32>
    %181 = arith.addf %169, %180 : vector<8x1024xf32>
    %c15 = arith.constant 15 : index
    %182 = memref.load %arg1[%c15] : memref<16xf32, #tpu.memory_space<smem>>
    %183 = vector.broadcast %182 : f32 to vector<8x1024xf32>
    %184 = arith.mulf %0, %183 : vector<8x1024xf32>
    %c15_47 = arith.constant 15 : index
    %185 = memref.load %arg2[%c15_47] : memref<16xf32, #tpu.memory_space<smem>>
    %186 = vector.broadcast %185 : f32 to vector<8x1024xf32>
    %187 = arith.addf %184, %186 : vector<8x1024xf32>
    %cst_48 = arith.constant 0.000000e+00 : f32
    %188 = vector.broadcast %cst_48 : f32 to vector<8x1024xf32>
    %189 = arith.maximumf %187, %188 : vector<8x1024xf32>
    %c15_49 = arith.constant 15 : index
    %190 = memref.load %arg3[%c15_49] : memref<16xf32, #tpu.memory_space<smem>>
    %191 = vector.broadcast %190 : f32 to vector<8x1024xf32>
    %192 = arith.mulf %189, %191 : vector<8x1024xf32>
    %193 = arith.addf %181, %192 : vector<8x1024xf32>
    %c0_50 = arith.constant 0 : index
    %194 = memref.load %arg4[%c0_50] : memref<1xf32, #tpu.memory_space<smem>>
    %195 = vector.broadcast %194 : f32 to vector<8x1024xf32>
    %196 = arith.addf %193, %195 : vector<8x1024xf32>
    %197 = arith.negf %196 : vector<8x1024xf32>
    %198 = math.exp %197 : vector<8x1024xf32>
    %cst_51 = arith.constant 1.000000e+00 : f32
    %199 = vector.broadcast %cst_51 : f32 to vector<8x1024xf32>
    %200 = arith.addf %199, %198 : vector<8x1024xf32>
    %201 = arith.divf %199, %200 : vector<8x1024xf32>
    %c0_52 = arith.constant 0 : index
    %c0_53 = arith.constant 0 : index
    %202 = vector.load %arg6[%c0_52, %c0_53] : memref<8x1024xf32, #tpu.memory_space<vmem>>, vector<8x1024xf32>
    tpu.vector_store %arg6[%c0_52, %c0_53], %201 {strides = array<i32>} : memref<8x1024xf32, #tpu.memory_space<vmem>>, vector<8x1024xf32>,
    return
  }
  func.func @transform_0(%arg0: i32) -> i32 {
    %c0_i32 = arith.constant 0 : i32
    %c0_i32_0 = arith.constant 0 : i32
    return %c0_i32 : i32
  }
  func.func @transform_1(%arg0: i32) -> i32 {
    %c0_i32 = arith.constant 0 : i32
    %c0_i32_0 = arith.constant 0 : i32
    return %c0_i32 : i32
  }
  func.func @transform_2(%arg0: i32) -> i32 {
    %c0_i32 = arith.constant 0 : i32
    %c0_i32_0 = arith.constant 0 : i32
    return %c0_i32 : i32
  }
  func.func @transform_3(%arg0: i32) -> i32 {
    %c0_i32 = arith.constant 0 : i32
    %c0_i32_0 = arith.constant 0 : i32
    return %c0_i32 : i32
  }
  func.func @transform_4(%arg0: i32) -> (i32, i32) {
    %c0_i32 = arith.constant 0 : i32
    %c0_i32_0 = arith.constant 0 : i32
    return %arg0, %c0_i32 : i32, i32
  }
  func.func @transform_5(%arg0: i32) -> (i32, i32) {
    %c0_i32 = arith.constant 0 : i32
    %c0_i32_0 = arith.constant 0 : i32
    return %arg0, %c0_i32 : i32, i32
  }
}

</mosaic_0001>

<llo_original>
// kernel: tpu_custom_call.1
$region0: #{tpu_custom_call.1}
  #allocation0 [shape = 'u32[]', space=smem, size = 0x4, offset = 0x4, fixed_abs, tag = 'smem constant byte address 0x4 - core index']
  #allocation1 [shape = 'u32[72,128]{1,0:T(1,128)}', space=vmem, size = 0x9000, scoped, tag = 'internal scratch']
  #allocation2 [shape = 'f32[1]{0:T(128)S(6)}', space=smem, size = 0x200, scoped, tag = 'scoped memory for tpu_custom_call.1']
  %s0 = inlined_call_operand.vmem [shape: f32[16], index: 0, kind: input, shape index: {}]
  %s1 = inlined_call_operand.vmem [shape: f32[16], index: 1, kind: input, shape index: {}]
  %s2 = inlined_call_operand.vmem [shape: f32[16], index: 2, kind: input, shape index: {}]
  %s3 = inlined_call_operand.<no memory space> [shape: f32[1], index: 3, kind: input, shape index: {}]
  %s4 = inlined_call_operand.hbm [shape: f32[8,1024], index: 4, kind: input, shape index: {}]
  %s5 = inlined_call_operand.hbm [shape: f32[8,1024], index: 5, kind: output, shape index: {}]
  %s6 = sld [smem:[#allocation0]]
  $region46: #{tpu_custom_call.1} parent=0
    _
  %s8 = ssub.s32 1, %s6
  %s9 = scalar_select 0, %s8, %s6
  %10 = sst [smem:[#allocation2]] %s3
  $region1: #{tpu_custom_call.1} parent=0
    #allocation3 [shape = 'u8[512]{0}', space=smem, size = 0x200, scoped, tag = 'input window, operand 0, single buffered']
    #allocation4 [shape = 's32[1]{0}', space=sflag, size = 0x4, scoped, tag = 'scoped memory for tpu_custom_call.1']
    #allocation5 [shape = 's32[1]{0}', space=sflag, size = 0x4, scoped, tag = 'scoped memory for tpu_custom_call.1']
    #allocation6 [shape = 's32[1]{0}', space=sflag, size = 0x4, scoped, tag = 'scoped memory for tpu_custom_call.1']
    #allocation7 [shape = 'u8[512]{0}', space=smem, size = 0x200, scoped, tag = 'input window, operand 1, single buffered']
    #allocation8 [shape = 's32[1]{0}', space=sflag, size = 0x4, scoped, tag = 'scoped memory for tpu_custom_call.1']
    #allocation9 [shape = 'u8[512]{0}', space=smem, size = 0x200, scoped, tag = 'input window, operand 2, single buffered']
    #allocation10 [shape = 'u8[32768]{0}', space=vmem, size = 0x8000, scoped, tag = 'input window, operand 4, single buffered']
    #allocation11 [shape = 'u8[32768]{0}', space=vmem, size = 0x8000, scoped, tag = 'output window, operand 0, single buffered']
    %11 = vsyncpa [#allocation6], 0
    %12 = vsyncpa [#allocation8], 0
    %13 = vsyncpa [#allocation4], 0
    %14 = vsyncpa [#allocation5], 0
    // Predicated region
    $region2: #{tpu_custom_call.1} parent=1 // pred_check
      _
    $region3: #{tpu_custom_call.1} parent=1 // pred_check_branch
      %16 = sbr.rel (0) target = $region5
    $region4: #{tpu_custom_call.1} parent=1 // pred_region
      %18 = vsyncadd [#allocation6], 0
      %s20 = sshll.u32 %s0, 4
      %s21 = int_to_ptr.vmem [resolvable:$true] %s20
      %23 = dma.vmem_to_smem %s21, 16, [#allocation3], [#allocation6]
    $region5: #{tpu_custom_call.1} parent=1 // pred_fallthru
      _
    // Predicated region
    $region6: #{tpu_custom_call.1} parent=1 // pred_check
      _
    $region7: #{tpu_custom_call.1} parent=1 // pred_check_branch
      %25 = sbr.rel (0) target = $region9
    $region8: #{tpu_custom_call.1} parent=1 // pred_region
      %27 = vsyncadd [#allocation8], 0
      %s29 = sshll.u32 %s1, 4
      %s30 = int_to_ptr.vmem [resolvable:$true] %s29
      %32 = dma.vmem_to_smem %s30, 16, [#allocation7], [#allocation8]
    $region9: #{tpu_custom_call.1} parent=1 // pred_fallthru
      _
    // Predicated region
    $region10: #{tpu_custom_call.1} parent=1 // pred_check
      _
    $region11: #{tpu_custom_call.1} parent=1 // pred_check_branch
      %34 = sbr.rel (0) target = $region13
    $region12: #{tpu_custom_call.1} parent=1 // pred_region
      %36 = vsyncadd [#allocation8], 0
      %s38 = sshll.u32 %s2, 4
      %s39 = int_to_ptr.vmem [resolvable:$true] %s38
      %41 = dma.vmem_to_smem %s39, 16, [#allocation9], [#allocation8]
    $region13: #{tpu_custom_call.1} parent=1 // pred_fallthru
      _
    // Predicated region
    $region14: #{tpu_custom_call.1} parent=1 // pred_check
      _
    $region15: #{tpu_custom_call.1} parent=1 // pred_check_branch
      %43 = sbr.rel (0) target = $region17
    $region16: #{tpu_custom_call.1} parent=1 // pred_region
      _
    $region17: #{tpu_custom_call.1} parent=1 // pred_fallthru
      _
    // Predicated region
    $region18: #{tpu_custom_call.1} parent=1 // pred_check
      _
    $region19: #{tpu_custom_call.1} parent=1 // pred_check_branch
      %45 = sbr.rel (0) target = $region21
    $region20: #{tpu_custom_call.1} parent=1 // pred_region
      %47 = vsyncadd [#allocation4], 0
      %s49 = sshll.u32 %s4, 4
      %s50 = int_to_ptr.hbm [resolvable:$true] %s49
      %s51 = sshll.u32 [#allocation10], 4
      %s52 = int_to_ptr.vmem [resolvable:$true] %s51
      %54 = dma.hbm_to_vmem [thread:$0]  %s50, 1024, %s52, [#allocation4]
    $region21: #{tpu_custom_call.1} parent=1 // pred_fallthru
      _
    // Predicated region
    $region22: #{tpu_custom_call.1} parent=1 // pred_check
      _
    $region23: #{tpu_custom_call.1} parent=1 // pred_check_branch
      %56 = sbr.rel (0) target = $region25
    $region24: #{tpu_custom_call.1} parent=1 // pred_region
      %58 = dma.done [#allocation6], 16
    $region25: #{tpu_custom_call.1} parent=1 // pred_fallthru
      _
    // Predicated region
    $region26: #{tpu_custom_call.1} parent=1 // pred_check
      _
    $region27: #{tpu_custom_call.1} parent=1 // pred_check_branch
      %60 = sbr.rel (0) target = $region29
    $region28: #{tpu_custom_call.1} parent=1 // pred_region
      %62 = dma.done [#allocation8], 16
    $region29: #{tpu_custom_call.1} parent=1 // pred_fallthru
      _
    // Predicated region
    $region30: #{tpu_custom_call.1} parent=1 // pred_check
      _
    $region31: #{tpu_custom_call.1} parent=1 // pred_check_branch
      %64 = sbr.rel (0) target = $region33
    $region32: #{tpu_custom_call.1} parent=1 // pred_region
      %66 = dma.done [#allocation8], 16
    $region33: #{tpu_custom_call.1} parent=1 // pred_fallthru
      _
    // Predicated region
    $region34: #{tpu_custom_call.1} parent=1 // pred_check
      _
    $region35: #{tpu_custom_call.1} parent=1 // pred_check_branch
      %68 = sbr.rel (0) target = $region37
    $region36: #{tpu_custom_call.1} parent=1 // pred_region
      %70 = dma.done [#allocation4], 1024
    $region37: #{tpu_custom_call.1} parent=1 // pred_fallthru
      _
    %71 = sfence
    %v72 = vld [vmem:[#allocation10] sm:$0xff]
    %v73 = vld [vmem:[#allocation10 + $0x8] sm:$0xff]
    %v74 = vld [vmem:[#allocation10 + $0x10] sm:$0xff]
    %v75 = vld [vmem:[#allocation10 + $0x18] sm:$0xff]
    %v76 = vld [vmem:[#allocation10 + $0x20] sm:$0xff]
    %v77 = vld [vmem:[#allocation10 + $0x28] sm:$0xff]
    %v78 = vld [vmem:[#allocation10 + $0x30] sm:$0xff]
    %v79 = vld [vmem:[#allocation10 + $0x38] sm:$0xff]
    %s80 = sld [smem:[#allocation3]]
    %v81 = vstv %s80
    %v82 = vmul.f32 %v72, %v81
    %v83 = vmul.f32 %v73, %v81
    %v84 = vmul.f32 %v74, %v81
    %v85 = vmul.f32 %v75, %v81
    %v86 = vmul.f32 %v76, %v81
    %v87 = vmul.f32 %v77, %v81
    %v88 = vmul.f32 %v78, %v81
    %v89 = vmul.f32 %v79, %v81
    %s90 = sld [smem:[#allocation7]]
    %v91 = vstv %s90
    %v92 = vadd.f32 %v82, %v91
    %v93 = vadd.f32 %v83, %v91
    %v94 = vadd.f32 %v84, %v91
    %v95 = vadd.f32 %v85, %v91
    %v96 = vadd.f32 %v86, %v91
    %v97 = vadd.f32 %v87, %v91
    %v98 = vadd.f32 %v88, %v91
    %v99 = vadd.f32 %v89, %v91
    %v100 = vmax.f32 %v92, 0.0
    %v101 = vmax.f32 %v93, 0.0
    %v102 = vmax.f32 %v94, 0.0
    %v103 = vmax.f32 %v95, 0.0
    %v104 = vmax.f32 %v96, 0.0
    %v105 = vmax.f32 %v97, 0.0
    %v106 = vmax.f32 %v98, 0.0
    %v107 = vmax.f32 %v99, 0.0
    %s108 = sld [smem:[#allocation9]]
    %v109 = vstv %s108
    %v110 = vmul.f32 %v100, %v109
    %v111 = vmul.f32 %v101, %v109
    %v112 = vmul.f32 %v102, %v109
    %v113 = vmul.f32 %v103, %v109
    %v114 = vmul.f32 %v104, %v109
    %v115 = vmul.f32 %v105, %v109
    %v116 = vmul.f32 %v106, %v109
    %v117 = vmul.f32 %v107, %v109
    %v118 = vadd.f32 %v110, 0.0
    %v119 = vadd.f32 %v111, 0.0
    %v120 = vadd.f32 %v112, 0.0
    %v121 = vadd.f32 %v113, 0.0
    %v122 = vadd.f32 %v114, 0.0
    %v123 = vadd.f32 %v115, 0.0
    %v124 = vadd.f32 %v116, 0.0
    %v125 = vadd.f32 %v117, 0.0
    %s126 = sld [smem:[#allocation3 + $0x1]]
    %v127 = vstv %s126
    %v128 = vmul.f32 %v72, %v127
    %v129 = vmul.f32 %v73, %v127
    %v130 = vmul.f32 %v74, %v127
    %v131 = vmul.f32 %v75, %v127
    %v132 = vmul.f32 %v76, %v127
    %v133 = vmul.f32 %v77, %v127
    %v134 = vmul.f32 %v78, %v127
    %v135 = vmul.f32 %v79, %v127
    %s136 = sld [smem:[#allocation7 + $0x1]]
    %v137 = vstv %s136
    %v138 = vadd.f32 %v128, %v137
    %v139 = vadd.f32 %v129, %v137
    %v140 = vadd.f32 %v130, %v137
    %v141 = vadd.f32 %v131, %v137
    %v142 = vadd.f32 %v132, %v137
    %v143 = vadd.f32 %v133, %v137
    %v144 = vadd.f32 %v134, %v137
    %v145 = vadd.f32 %v135, %v137
    %v146 = vmax.f32 %v138, 0.0
    %v147 = vmax.f32 %v139, 0.0
    %v148 = vmax.f32 %v140, 0.0
    %v149 = vmax.f32 %v141, 0.0
    %v150 = vmax.f32 %v142, 0.0
    %v151 = vmax.f32 %v143, 0.0
    %v152 = vmax.f32 %v144, 0.0
    %v153 = vmax.f32 %v145, 0.0
    %s154 = sld [smem:[#allocation9 + $0x1]]
    %v155 = vstv %s154
    %v156 = vmul.f32 %v146, %v155
    %v157 = vmul.f32 %v147, %v155
    %v158 = vmul.f32 %v148, %v155
    %v159 = vmul.f32 %v149, %v155
    %v160 = vmul.f32 %v150, %v155
    %v161 = vmul.f32 %v151, %v155
    %v162 = vmul.f32 %v152, %v155
    %v163 = vmul.f32 %v153, %v155
    %v164 = vadd.f32 %v118, %v156
    %v165 = vadd.f32 %v119, %v157
    %v166 = vadd.f32 %v120, %v158
    %v167 = vadd.f32 %v121, %v159
    %v168 = vadd.f32 %v122, %v160
    %v169 = vadd.f32 %v123, %v161
    %v170 = vadd.f32 %v124, %v162
    %v171 = vadd.f32 %v125, %v163
    %s172 = sld [smem:[#allocation3 + $0x2]]
    %v173 = vstv %s172
    %v174 = vmul.f32 %v72, %v173
    %v175 = vmul.f32 %v73, %v173
    %v176 = vmul.f32 %v74, %v173
    %v177 = vmul.f32 %v75, %v173
    %v178 = vmul.f32 %v76, %v173
    %v179 = vmul.f32 %v77, %v173
    %v180 = vmul.f32 %v78, %v173
    %v181 = vmul.f32 %v79, %v173
    %s182 = sld [smem:[#allocation7 + $0x2]]
    %v183 = vstv %s182
    %v184 = vadd.f32 %v174, %v183
    %v185 = vadd.f32 %v175, %v183
    %v186 = vadd.f32 %v176, %v183
    %v187 = vadd.f32 %v177, %v183
    %v188 = vadd.f32 %v178, %v183
    %v189 = vadd.f32 %v179, %v183
    %v190 = vadd.f32 %v180, %v183
    %v191 = vadd.f32 %v181, %v183
    %v192 = vmax.f32 %v184, 0.0
    %v193 = vmax.f32 %v185, 0.0
    %v194 = vmax.f32 %v186, 0.0
    %v195 = vmax.f32 %v187, 0.0
    %v196 = vmax.f32 %v188, 0.0
    %v197 = vmax.f32 %v189, 0.0
    %v198 = vmax.f32 %v190, 0.0
    %v199 = vmax.f32 %v191, 0.0
    %s200 = sld [smem:[#allocation9 + $0x2]]
    %v201 = vstv %s200
    %v202 = vmul.f32 %v192, %v201
    %v203 = vmul.f32 %v193, %v201
    %v204 = vmul.f32 %v194, %v201
    %v205 = vmul.f32 %v195, %v201
    %v206 = vmul.f32 %v196, %v201
    %v207 = vmul.f32 %v197, %v201
    %v208 = vmul.f32 %v198, %v201
    %v209 = vmul.f32 %v199, %v201
    %v210 = vadd.f32 %v164, %v202
    %v211 = vadd.f32 %v165, %v203
    %v212 = vadd.f32 %v166, %v204
    %v213 = vadd.f32 %v167, %v205
    %v214 = vadd.f32 %v168, %v206
    %v215 = vadd.f32 %v169, %v207
    %v216 = vadd.f32 %v170, %v208
    %v217 = vadd.f32 %v171, %v209
    %s218 = sld [smem:[#allocation3 + $0x3]]
    %v219 = vstv %s218
    %v220 = vmul.f32 %v72, %v219
    %v221 = vmul.f32 %v73, %v219
    %v222 = vmul.f32 %v74, %v219
    %v223 = vmul.f32 %v75, %v219
    %v224 = vmul.f32 %v76, %v219
    %v225 = vmul.f32 %v77, %v219
    %v226 = vmul.f32 %v78, %v219
    %v227 = vmul.f32 %v79, %v219
    %s228 = sld [smem:[#allocation7 + $0x3]]
    %v229 = vstv %s228
    %v230 = vadd.f32 %v220, %v229
    %v231 = vadd.f32 %v221, %v229
    %v232 = vadd.f32 %v222, %v229
    %v233 = vadd.f32 %v223, %v229
    %v234 = vadd.f32 %v224, %v229
    %v235 = vadd.f32 %v225, %v229
    %v236 = vadd.f32 %v226, %v229
    %v237 = vadd.f32 %v227, %v229
    %v238 = vmax.f32 %v230, 0.0
    %v239 = vmax.f32 %v231, 0.0
    %v240 = vmax.f32 %v232, 0.0
    %v241 = vmax.f32 %v233, 0.0
    %v242 = vmax.f32 %v234, 0.0
    %v243 = vmax.f32 %v235, 0.0
    %v244 = vmax.f32 %v236, 0.0
    %v245 = vmax.f32 %v237, 0.0
    %s246 = sld [smem:[#allocation9 + $0x3]]
    %v247 = vstv %s246
    %v248 = vmul.f32 %v238, %v247
    %v249 = vmul.f32 %v239, %v247
    %v250 = vmul.f32 %v240, %v247
    %v251 = vmul.f32 %v241, %v247
    %v252 = vmul.f32 %v242, %v247
    %v253 = vmul.f32 %v243, %v247
    %v254 = vmul.f32 %v244, %v247
    %v255 = vmul.f32 %v245, %v247
    %v256 = vadd.f32 %v210, %v248
    %v257 = vadd.f32 %v211, %v249
    %v258 = vadd.f32 %v212, %v250
    %v259 = vadd.f32 %v213, %v251
    %v260 = vadd.f32 %v214, %v252
    %v261 = vadd.f32 %v215, %v253
    %v262 = vadd.f32 %v216, %v254
    %v263 = vadd.f32 %v217, %v255
    %s264 = sld [smem:[#allocation3 + $0x4]]
    %v265 = vstv %s264
    %v266 = vmul.f32 %v72, %v265
    %v267 = vmul.f32 %v73, %v265
    %v268 = vmul.f32 %v74, %v265
    %v269 = vmul.f32 %v75, %v265
    %v270 = vmul.f32 %v76, %v265
    %v271 = vmul.f32 %v77, %v265
    %v272 = vmul.f32 %v78, %v265
    %v273 = vmul.f32 %v79, %v265
    %s274 = sld [smem:[#allocation7 + $0x4]]
    %v275 = vstv %s274
    %v276 = vadd.f32 %v266, %v275
    %v277 = vadd.f32 %v267, %v275
    %v278 = vadd.f32 %v268, %v275
    %v279 = vadd.f32 %v269, %v275
    %v280 = vadd.f32 %v270, %v275
    %v281 = vadd.f32 %v271, %v275
    %v282 = vadd.f32 %v272, %v275
    %v283 = vadd.f32 %v273, %v275
    %v284 = vmax.f32 %v276, 0.0
    %v285 = vmax.f32 %v277, 0.0
    %v286 = vmax.f32 %v278, 0.0
    %v287 = vmax.f32 %v279, 0.0
    %v288 = vmax.f32 %v280, 0.0
    %v289 = vmax.f32 %v281, 0.0
    %v290 = vmax.f32 %v282, 0.0
    %v291 = vmax.f32 %v283, 0.0
    %s292 = sld [smem:[#allocation9 + $0x4]]
    %v293 = vstv %s292
    %v294 = vmul.f32 %v284, %v293
    %v295 = vmul.f32 %v285, %v293
    %v296 = vmul.f32 %v286, %v293
    %v297 = vmul.f32 %v287, %v293
    %v298 = vmul.f32 %v288, %v293
    %v299 = vmul.f32 %v289, %v293
    %v300 = vmul.f32 %v290, %v293
    %v301 = vmul.f32 %v291, %v293
    %v302 = vadd.f32 %v256, %v294
    %v303 = vadd.f32 %v257, %v295
    %v304 = vadd.f32 %v258, %v296
    %v305 = vadd.f32 %v259, %v297
    %v306 = vadd.f32 %v260, %v298
    %v307 = vadd.f32 %v261, %v299
    %v308 = vadd.f32 %v262, %v300
    %v309 = vadd.f32 %v263, %v301
    %s310 = sld [smem:[#allocation3 + $0x5]]
    %v311 = vstv %s310
    %v312 = vmul.f32 %v72, %v311
    %v313 = vmul.f32 %v73, %v311
    %v314 = vmul.f32 %v74, %v311
    %v315 = vmul.f32 %v75, %v311
    %v316 = vmul.f32 %v76, %v311
    %v317 = vmul.f32 %v77, %v311
    %v318 = vmul.f32 %v78, %v311
    %v319 = vmul.f32 %v79, %v311
    %s320 = sld [smem:[#allocation7 + $0x5]]
    %v321 = vstv %s320
    %v322 = vadd.f32 %v312, %v321
    %v323 = vadd.f32 %v313, %v321
    %v324 = vadd.f32 %v314, %v321
    %v325 = vadd.f32 %v315, %v321
    %v326 = vadd.f32 %v316, %v321
    %v327 = vadd.f32 %v317, %v321
    %v328 = vadd.f32 %v318, %v321
    %v329 = vadd.f32 %v319, %v321
    %v330 = vmax.f32 %v322, 0.0
    %v331 = vmax.f32 %v323, 0.0
    %v332 = vmax.f32 %v324, 0.0
    %v333 = vmax.f32 %v325, 0.0
    %v334 = vmax.f32 %v326, 0.0
    %v335 = vmax.f32 %v327, 0.0
    %v336 = vmax.f32 %v328, 0.0
    %v337 = vmax.f32 %v329, 0.0
    %s338 = sld [smem:[#allocation9 + $0x5]]
    %v339 = vstv %s338
    %v340 = vmul.f32 %v330, %v339
    %v341 = vmul.f32 %v331, %v339
    %v342 = vmul.f32 %v332, %v339
    %v343 = vmul.f32 %v333, %v339
    %v344 = vmul.f32 %v334, %v339
    %v345 = vmul.f32 %v335, %v339
    %v346 = vmul.f32 %v336, %v339
    %v347 = vmul.f32 %v337, %v339
    %v348 = vadd.f32 %v302, %v340
    %v349 = vadd.f32 %v303, %v341
    %v350 = vadd.f32 %v304, %v342
    %v351 = vadd.f32 %v305, %v343
    %v352 = vadd.f32 %v306, %v344
    %v353 = vadd.f32 %v307, %v345
    %v354 = vadd.f32 %v308, %v346
    %v355 = vadd.f32 %v309, %v347
    %s356 = sld [smem:[#allocation3 + $0x6]]
    %v357 = vstv %s356
    %v358 = vmul.f32 %v72, %v357
    %v359 = vmul.f32 %v73, %v357
    %v360 = vmul.f32 %v74, %v357
    %v361 = vmul.f32 %v75, %v357
    %v362 = vmul.f32 %v76, %v357
    %v363 = vmul.f32 %v77, %v357
    %v364 = vmul.f32 %v78, %v357
    %v365 = vmul.f32 %v79, %v357
    %s366 = sld [smem:[#allocation7 + $0x6]]
    %v367 = vstv %s366
    %v368 = vadd.f32 %v358, %v367
    %v369 = vadd.f32 %v359, %v367
    %v370 = vadd.f32 %v360, %v367
    %v371 = vadd.f32 %v361, %v367
    %v372 = vadd.f32 %v362, %v367
    %v373 = vadd.f32 %v363, %v367
    %v374 = vadd.f32 %v364, %v367
    %v375 = vadd.f32 %v365, %v367
    %v376 = vmax.f32 %v368, 0.0
    %v377 = vmax.f32 %v369, 0.0
    %v378 = vmax.f32 %v370, 0.0
    %v379 = vmax.f32 %v371, 0.0
    %v380 = vmax.f32 %v372, 0.0
    %v381 = vmax.f32 %v373, 0.0
    %v382 = vmax.f32 %v374, 0.0
    %v383 = vmax.f32 %v375, 0.0
    %s384 = sld [smem:[#allocation9 + $0x6]]
    %v385 = vstv %s384
    %v386 = vmul.f32 %v376, %v385
    %v387 = vmul.f32 %v377, %v385
    %v388 = vmul.f32 %v378, %v385
    %v389 = vmul.f32 %v379, %v385
    %v390 = vmul.f32 %v380, %v385
    %v391 = vmul.f32 %v381, %v385
    %v392 = vmul.f32 %v382, %v385
    %v393 = vmul.f32 %v383, %v385
    %v394 = vadd.f32 %v348, %v386
    %v395 = vadd.f32 %v349, %v387
    %v396 = vadd.f32 %v350, %v388
    %v397 = vadd.f32 %v351, %v389
    %v398 = vadd.f32 %v352, %v390
    %v399 = vadd.f32 %v353, %v391
    %v400 = vadd.f32 %v354, %v392
    %v401 = vadd.f32 %v355, %v393
    %s402 = sld [smem:[#allocation3 + $0x7]]
    %v403 = vstv %s402
    %v404 = vmul.f32 %v72, %v403
    %v405 = vmul.f32 %v73, %v403
    %v406 = vmul.f32 %v74, %v403
    %v407 = vmul.f32 %v75, %v403
    %v408 = vmul.f32 %v76, %v403
    %v409 = vmul.f32 %v77, %v403
    %v410 = vmul.f32 %v78, %v403
    %v411 = vmul.f32 %v79, %v403
    %s412 = sld [smem:[#allocation7 + $0x7]]
    %v413 = vstv %s412
    %v414 = vadd.f32 %v404, %v413
    %v415 = vadd.f32 %v405, %v413
    %v416 = vadd.f32 %v406, %v413
    %v417 = vadd.f32 %v407, %v413
    %v418 = vadd.f32 %v408, %v413
    %v419 = vadd.f32 %v409, %v413
    %v420 = vadd.f32 %v410, %v413
    %v421 = vadd.f32 %v411, %v413
    %v422 = vmax.f32 %v414, 0.0
    %v423 = vmax.f32 %v415, 0.0
    %v424 = vmax.f32 %v416, 0.0
    %v425 = vmax.f32 %v417, 0.0
    %v426 = vmax.f32 %v418, 0.0
    %v427 = vmax.f32 %v419, 0.0
    %v428 = vmax.f32 %v420, 0.0
    %v429 = vmax.f32 %v421, 0.0
    %s430 = sld [smem:[#allocation9 + $0x7]]
    %v431 = vstv %s430
    %v432 = vmul.f32 %v422, %v431
    %v433 = vmul.f32 %v423, %v431
    %v434 = vmul.f32 %v424, %v431
    %v435 = vmul.f32 %v425, %v431
    %v436 = vmul.f32 %v426, %v431
    %v437 = vmul.f32 %v427, %v431
    %v438 = vmul.f32 %v428, %v431
    %v439 = vmul.f32 %v429, %v431
    %v440 = vadd.f32 %v394, %v432
    %v441 = vadd.f32 %v395, %v433
    %v442 = vadd.f32 %v396, %v434
    %v443 = vadd.f32 %v397, %v435
    %v444 = vadd.f32 %v398, %v436
    %v445 = vadd.f32 %v399, %v437
    %v446 = vadd.f32 %v400, %v438
    %v447 = vadd.f32 %v401, %v439
    %s448 = sld [smem:[#allocation3 + $0x8]]
    %v449 = vstv %s448
    %v450 = vmul.f32 %v72, %v449
    %v451 = vmul.f32 %v73, %v449
    %v452 = vmul.f32 %v74, %v449
    %v453 = vmul.f32 %v75, %v449
    %v454 = vmul.f32 %v76, %v449
    %v455 = vmul.f32 %v77, %v449
    %v456 = vmul.f32 %v78, %v449
    %v457 = vmul.f32 %v79, %v449
    %s458 = sld [smem:[#allocation7 + $0x8]]
    %v459 = vstv %s458
    %v460 = vadd.f32 %v450, %v459
    %v461 = vadd.f32 %v451, %v459
    %v462 = vadd.f32 %v452, %v459
    %v463 = vadd.f32 %v453, %v459
    %v464 = vadd.f32 %v454, %v459
    %v465 = vadd.f32 %v455, %v459
    %v466 = vadd.f32 %v456, %v459
    %v467 = vadd.f32 %v457, %v459
    %v468 = vmax.f32 %v460, 0.0
    %v469 = vmax.f32 %v461, 0.0
    %v470 = vmax.f32 %v462, 0.0
    %v471 = vmax.f32 %v463, 0.0
    %v472 = vmax.f32 %v464, 0.0
    %v473 = vmax.f32 %v465, 0.0
    %v474 = vmax.f32 %v466, 0.0
    %v475 = vmax.f32 %v467, 0.0
    %s476 = sld [smem:[#allocation9 + $0x8]]
    %v477 = vstv %s476
    %v478 = vmul.f32 %v468, %v477
    %v479 = vmul.f32 %v469, %v477
    %v480 = vmul.f32 %v470, %v477
    %v481 = vmul.f32 %v471, %v477
    %v482 = vmul.f32 %v472, %v477
    %v483 = vmul.f32 %v473, %v477
    %v484 = vmul.f32 %v474, %v477
    %v485 = vmul.f32 %v475, %v477
    %v486 = vadd.f32 %v440, %v478
    %v487 = vadd.f32 %v441, %v479
    %v488 = vadd.f32 %v442, %v480
    %v489 = vadd.f32 %v443, %v481
    %v490 = vadd.f32 %v444, %v482
    %v491 = vadd.f32 %v445, %v483
    %v492 = vadd.f32 %v446, %v484
    %v493 = vadd.f32 %v447, %v485
    %s494 = sld [smem:[#allocation3 + $0x9]]
    %v495 = vstv %s494
    %v496 = vmul.f32 %v72, %v495
    %v497 = vmul.f32 %v73, %v495
    %v498 = vmul.f32 %v74, %v495
    %v499 = vmul.f32 %v75, %v495
    %v500 = vmul.f32 %v76, %v495
    %v501 = vmul.f32 %v77, %v495
    %v502 = vmul.f32 %v78, %v495
    %v503 = vmul.f32 %v79, %v495
    %s504 = sld [smem:[#allocation7 + $0x9]]
    %v505 = vstv %s504
    %v506 = vadd.f32 %v496, %v505
    %v507 = vadd.f32 %v497, %v505
    %v508 = vadd.f32 %v498, %v505
    %v509 = vadd.f32 %v499, %v505
    %v510 = vadd.f32 %v500, %v505
    %v511 = vadd.f32 %v501, %v505
    %v512 = vadd.f32 %v502, %v505
    %v513 = vadd.f32 %v503, %v505
    %v514 = vmax.f32 %v506, 0.0
    %v515 = vmax.f32 %v507, 0.0
    %v516 = vmax.f32 %v508, 0.0
    %v517 = vmax.f32 %v509, 0.0
    %v518 = vmax.f32 %v510, 0.0
    %v519 = vmax.f32 %v511, 0.0
    %v520 = vmax.f32 %v512, 0.0
    %v521 = vmax.f32 %v513, 0.0
    %s522 = sld [smem:[#allocation9 + $0x9]]
    %v523 = vstv %s522
    %v524 = vmul.f32 %v514, %v523
    %v525 = vmul.f32 %v515, %v523
    %v526 = vmul.f32 %v516, %v523
    %v527 = vmul.f32 %v517, %v523
    %v528 = vmul.f32 %v518, %v523
    %v529 = vmul.f32 %v519, %v523
    %v530 = vmul.f32 %v520, %v523
    %v531 = vmul.f32 %v521, %v523
    %v532 = vadd.f32 %v486, %v524
    %v533 = vadd.f32 %v487, %v525
    %v534 = vadd.f32 %v488, %v526
    %v535 = vadd.f32 %v489, %v527
    %v536 = vadd.f32 %v490, %v528
    %v537 = vadd.f32 %v491, %v529
    %v538 = vadd.f32 %v492, %v530
    %v539 = vadd.f32 %v493, %v531
    %s540 = sld [smem:[#allocation3 + $0xa]]
    %v541 = vstv %s540
    %v542 = vmul.f32 %v72, %v541
    %v543 = vmul.f32 %v73, %v541
    %v544 = vmul.f32 %v74, %v541
    %v545 = vmul.f32 %v75, %v541
    %v546 = vmul.f32 %v76, %v541
    %v547 = vmul.f32 %v77, %v541
    %v548 = vmul.f32 %v78, %v541
    %v549 = vmul.f32 %v79, %v541
    %s550 = sld [smem:[#allocation7 + $0xa]]
    %v551 = vstv %s550
    %v552 = vadd.f32 %v542, %v551
    %v553 = vadd.f32 %v543, %v551
    %v554 = vadd.f32 %v544, %v551
    %v555 = vadd.f32 %v545, %v551
    %v556 = vadd.f32 %v546, %v551
    %v557 = vadd.f32 %v547, %v551
    %v558 = vadd.f32 %v548, %v551
    %v559 = vadd.f32 %v549, %v551
    %v560 = vmax.f32 %v552, 0.0
    %v561 = vmax.f32 %v553, 0.0
    %v562 = vmax.f32 %v554, 0.0
    %v563 = vmax.f32 %v555, 0.0
    %v564 = vmax.f32 %v556, 0.0
    %v565 = vmax.f32 %v557, 0.0
    %v566 = vmax.f32 %v558, 0.0
    %v567 = vmax.f32 %v559, 0.0
    %s568 = sld [smem:[#allocation9 + $0xa]]
    %v569 = vstv %s568
    %v570 = vmul.f32 %v560, %v569
    %v571 = vmul.f32 %v561, %v569
    %v572 = vmul.f32 %v562, %v569
    %v573 = vmul.f32 %v563, %v569
    %v574 = vmul.f32 %v564, %v569
    %v575 = vmul.f32 %v565, %v569
    %v576 = vmul.f32 %v566, %v569
    %v577 = vmul.f32 %v567, %v569
    %v578 = vadd.f32 %v532, %v570
    %v579 = vadd.f32 %v533, %v571
    %v580 = vadd.f32 %v534, %v572
    %v581 = vadd.f32 %v535, %v573
    %v582 = vadd.f32 %v536, %v574
    %v583 = vadd.f32 %v537, %v575
    %v584 = vadd.f32 %v538, %v576
    %v585 = vadd.f32 %v539, %v577
    %s586 = sld [smem:[#allocation3 + $0xb]]
    %v587 = vstv %s586
    %v588 = vmul.f32 %v72, %v587
    %v589 = vmul.f32 %v73, %v587
    %v590 = vmul.f32 %v74, %v587
    %v591 = vmul.f32 %v75, %v587
    %v592 = vmul.f32 %v76, %v587
    %v593 = vmul.f32 %v77, %v587
    %v594 = vmul.f32 %v78, %v587
    %v595 = vmul.f32 %v79, %v587
    %s596 = sld [smem:[#allocation7 + $0xb]]
    %v597 = vstv %s596
    %v598 = vadd.f32 %v588, %v597
    %v599 = vadd.f32 %v589, %v597
    %v600 = vadd.f32 %v590, %v597
    %v601 = vadd.f32 %v591, %v597
    %v602 = vadd.f32 %v592, %v597
    %v603 = vadd.f32 %v593, %v597
    %v604 = vadd.f32 %v594, %v597
    %v605 = vadd.f32 %v595, %v597
    %v606 = vmax.f32 %v598, 0.0
    %v607 = vmax.f32 %v599, 0.0
    %v608 = vmax.f32 %v600, 0.0
    %v609 = vmax.f32 %v601, 0.0
    %v610 = vmax.f32 %v602, 0.0
    %v611 = vmax.f32 %v603, 0.0
    %v612 = vmax.f32 %v604, 0.0
    %v613 = vmax.f32 %v605, 0.0
    %s614 = sld [smem:[#allocation9 + $0xb]]
    %v615 = vstv %s614
    %v616 = vmul.f32 %v606, %v615
    %v617 = vmul.f32 %v607, %v615
    %v618 = vmul.f32 %v608, %v615
    %v619 = vmul.f32 %v609, %v615
    %v620 = vmul.f32 %v610, %v615
    %v621 = vmul.f32 %v611, %v615
    %v622 = vmul.f32 %v612, %v615
    %v623 = vmul.f32 %v613, %v615
    %v624 = vadd.f32 %v578, %v616
    %v625 = vadd.f32 %v579, %v617
    %v626 = vadd.f32 %v580, %v618
    %v627 = vadd.f32 %v581, %v619
    %v628 = vadd.f32 %v582, %v620
    %v629 = vadd.f32 %v583, %v621
    %v630 = vadd.f32 %v584, %v622
    %v631 = vadd.f32 %v585, %v623
    %s632 = sld [smem:[#allocation3 + $0xc]]
    %v633 = vstv %s632
    %v634 = vmul.f32 %v72, %v633
    %v635 = vmul.f32 %v73, %v633
    %v636 = vmul.f32 %v74, %v633
    %v637 = vmul.f32 %v75, %v633
    %v638 = vmul.f32 %v76, %v633
    %v639 = vmul.f32 %v77, %v633
    %v640 = vmul.f32 %v78, %v633
    %v641 = vmul.f32 %v79, %v633
    %s642 = sld [smem:[#allocation7 + $0xc]]
    %v643 = vstv %s642
    %v644 = vadd.f32 %v634, %v643
    %v645 = vadd.f32 %v635, %v643
    %v646 = vadd.f32 %v636, %v643
    %v647 = vadd.f32 %v637, %v643
    %v648 = vadd.f32 %v638, %v643
    %v649 = vadd.f32 %v639, %v643
    %v650 = vadd.f32 %v640, %v643
    %v651 = vadd.f32 %v641, %v643
    %v652 = vmax.f32 %v644, 0.0
    %v653 = vmax.f32 %v645, 0.0
    %v654 = vmax.f32 %v646, 0.0
    %v655 = vmax.f32 %v647, 0.0
    %v656 = vmax.f32 %v648, 0.0
    %v657 = vmax.f32 %v649, 0.0
    %v658 = vmax.f32 %v650, 0.0
    %v659 = vmax.f32 %v651, 0.0
    %s660 = sld [smem:[#allocation9 + $0xc]]
    %v661 = vstv %s660
    %v662 = vmul.f32 %v652, %v661
    %v663 = vmul.f32 %v653, %v661
    %v664 = vmul.f32 %v654, %v661
    %v665 = vmul.f32 %v655, %v661
    %v666 = vmul.f32 %v656, %v661
    %v667 = vmul.f32 %v657, %v661
    %v668 = vmul.f32 %v658, %v661
    %v669 = vmul.f32 %v659, %v661
    %v670 = vadd.f32 %v624, %v662
    %v671 = vadd.f32 %v625, %v663
    %v672 = vadd.f32 %v626, %v664
    %v673 = vadd.f32 %v627, %v665
    %v674 = vadd.f32 %v628, %v666
    %v675 = vadd.f32 %v629, %v667
    %v676 = vadd.f32 %v630, %v668
    %v677 = vadd.f32 %v631, %v669
    %s678 = sld [smem:[#allocation3 + $0xd]]
    %v679 = vstv %s678
    %v680 = vmul.f32 %v72, %v679
    %v681 = vmul.f32 %v73, %v679
    %v682 = vmul.f32 %v74, %v679
    %v683 = vmul.f32 %v75, %v679
    %v684 = vmul.f32 %v76, %v679
    %v685 = vmul.f32 %v77, %v679
    %v686 = vmul.f32 %v78, %v679
    %v687 = vmul.f32 %v79, %v679
    %s688 = sld [smem:[#allocation7 + $0xd]]
    %v689 = vstv %s688
    %v690 = vadd.f32 %v680, %v689
    %v691 = vadd.f32 %v681, %v689
    %v692 = vadd.f32 %v682, %v689
    %v693 = vadd.f32 %v683, %v689
    %v694 = vadd.f32 %v684, %v689
    %v695 = vadd.f32 %v685, %v689
    %v696 = vadd.f32 %v686, %v689
    %v697 = vadd.f32 %v687, %v689
    %v698 = vmax.f32 %v690, 0.0
    %v699 = vmax.f32 %v691, 0.0
    %v700 = vmax.f32 %v692, 0.0
    %v701 = vmax.f32 %v693, 0.0
    %v702 = vmax.f32 %v694, 0.0
    %v703 = vmax.f32 %v695, 0.0
    %v704 = vmax.f32 %v696, 0.0
    %v705 = vmax.f32 %v697, 0.0
    %s706 = sld [smem:[#allocation9 + $0xd]]
    %v707 = vstv %s706
    %v708 = vmul.f32 %v698, %v707
    %v709 = vmul.f32 %v699, %v707
    %v710 = vmul.f32 %v700, %v707
    %v711 = vmul.f32 %v701, %v707
    %v712 = vmul.f32 %v702, %v707
    %v713 = vmul.f32 %v703, %v707
    %v714 = vmul.f32 %v704, %v707
    %v715 = vmul.f32 %v705, %v707
    %v716 = vadd.f32 %v670, %v708
    %v717 = vadd.f32 %v671, %v709
    %v718 = vadd.f32 %v672, %v710
    %v719 = vadd.f32 %v673, %v711
    %v720 = vadd.f32 %v674, %v712
    %v721 = vadd.f32 %v675, %v713
    %v722 = vadd.f32 %v676, %v714
    %v723 = vadd.f32 %v677, %v715
    %s724 = sld [smem:[#allocation3 + $0xe]]
    %v725 = vstv %s724
    %v726 = vmul.f32 %v72, %v725
    %v727 = vmul.f32 %v73, %v725
    %v728 = vmul.f32 %v74, %v725
    %v729 = vmul.f32 %v75, %v725
    %v730 = vmul.f32 %v76, %v725
    %v731 = vmul.f32 %v77, %v725
    %v732 = vmul.f32 %v78, %v725
    %v733 = vmul.f32 %v79, %v725
    %s734 = sld [smem:[#allocation7 + $0xe]]
    %v735 = vstv %s734
    %v736 = vadd.f32 %v726, %v735
    %v737 = vadd.f32 %v727, %v735
    %v738 = vadd.f32 %v728, %v735
    %v739 = vadd.f32 %v729, %v735
    %v740 = vadd.f32 %v730, %v735
    %v741 = vadd.f32 %v731, %v735
    %v742 = vadd.f32 %v732, %v735
    %v743 = vadd.f32 %v733, %v735
    %v744 = vmax.f32 %v736, 0.0
    %v745 = vmax.f32 %v737, 0.0
    %v746 = vmax.f32 %v738, 0.0
    %v747 = vmax.f32 %v739, 0.0
    %v748 = vmax.f32 %v740, 0.0
    %v749 = vmax.f32 %v741, 0.0
    %v750 = vmax.f32 %v742, 0.0
    %v751 = vmax.f32 %v743, 0.0
    %s752 = sld [smem:[#allocation9 + $0xe]]
    %v753 = vstv %s752
    %v754 = vmul.f32 %v744, %v753
    %v755 = vmul.f32 %v745, %v753
    %v756 = vmul.f32 %v746, %v753
    %v757 = vmul.f32 %v747, %v753
    %v758 = vmul.f32 %v748, %v753
    %v759 = vmul.f32 %v749, %v753
    %v760 = vmul.f32 %v750, %v753
    %v761 = vmul.f32 %v751, %v753
    %v762 = vadd.f32 %v716, %v754
    %v763 = vadd.f32 %v717, %v755
    %v764 = vadd.f32 %v718, %v756
    %v765 = vadd.f32 %v719, %v757
    %v766 = vadd.f32 %v720, %v758
    %v767 = vadd.f32 %v721, %v759
    %v768 = vadd.f32 %v722, %v760
    %v769 = vadd.f32 %v723, %v761
    %s770 = sld [smem:[#allocation3 + $0xf]]
    %v771 = vstv %s770
    %v772 = vmul.f32 %v72, %v771
    %v773 = vmul.f32 %v73, %v771
    %v774 = vmul.f32 %v74, %v771
    %v775 = vmul.f32 %v75, %v771
    %v776 = vmul.f32 %v76, %v771
    %v777 = vmul.f32 %v77, %v771
    %v778 = vmul.f32 %v78, %v771
    %v779 = vmul.f32 %v79, %v771
    %s780 = sld [smem:[#allocation7 + $0xf]]
    %v781 = vstv %s780
    %v782 = vadd.f32 %v772, %v781
    %v783 = vadd.f32 %v773, %v781
    %v784 = vadd.f32 %v774, %v781
    %v785 = vadd.f32 %v775, %v781
    %v786 = vadd.f32 %v776, %v781
    %v787 = vadd.f32 %v777, %v781
    %v788 = vadd.f32 %v778, %v781
    %v789 = vadd.f32 %v779, %v781
    %v790 = vmax.f32 %v782, 0.0
    %v791 = vmax.f32 %v783, 0.0
    %v792 = vmax.f32 %v784, 0.0
    %v793 = vmax.f32 %v785, 0.0
    %v794 = vmax.f32 %v786, 0.0
    %v795 = vmax.f32 %v787, 0.0
    %v796 = vmax.f32 %v788, 0.0
    %v797 = vmax.f32 %v789, 0.0
    %s798 = sld [smem:[#allocation9 + $0xf]]
    %v799 = vstv %s798
    %v800 = vmul.f32 %v790, %v799
    %v801 = vmul.f32 %v791, %v799
    %v802 = vmul.f32 %v792, %v799
    %v803 = vmul.f32 %v793, %v799
    %v804 = vmul.f32 %v794, %v799
    %v805 = vmul.f32 %v795, %v799
    %v806 = vmul.f32 %v796, %v799
    %v807 = vmul.f32 %v797, %v799
    %v808 = vadd.f32 %v762, %v800
    %v809 = vadd.f32 %v763, %v801
    %v810 = vadd.f32 %v764, %v802
    %v811 = vadd.f32 %v765, %v803
    %v812 = vadd.f32 %v766, %v804
    %v813 = vadd.f32 %v767, %v805
    %v814 = vadd.f32 %v768, %v806
    %v815 = vadd.f32 %v769, %v807
    %s816 = sld [smem:[#allocation2]]
    %v817 = vstv %s816
    %v818 = vadd.f32 %v808, %v817
    %v819 = vadd.f32 %v809, %v817
    %v820 = vadd.f32 %v810, %v817
    %v821 = vadd.f32 %v811, %v817
    %v822 = vadd.f32 %v812, %v817
    %v823 = vadd.f32 %v813, %v817
    %v824 = vadd.f32 %v814, %v817
    %v825 = vadd.f32 %v815, %v817
    %v826 = vxor.u32 %v818, 2147483648
    %v827 = vxor.u32 %v819, 2147483648
    %v828 = vxor.u32 %v820, 2147483648
    %v829 = vxor.u32 %v821, 2147483648
    %v830 = vxor.u32 %v822, 2147483648
    %v831 = vxor.u32 %v823, 2147483648
    %v832 = vxor.u32 %v824, 2147483648
    %v833 = vxor.u32 %v825, 2147483648
    %v834 = vmul.f32 %v826, 1.442695
    %v835 = vpow.pop %v834
    %v836 = vmul.f32 %v827, 1.442695
    %v837 = vpow.pop %v836
    %v838 = vmul.f32 %v828, 1.442695
    %v839 = vpow.pop %v838
    %v840 = vmul.f32 %v829, 1.442695
    %v841 = vpow.pop %v840
    %v842 = vmul.f32 %v830, 1.442695
    %v843 = vpow.pop %v842
    %v844 = vmul.f32 %v831, 1.442695
    %v845 = vpow.pop %v844
    %v846 = vmul.f32 %v832, 1.442695
    %v847 = vpow.pop %v846
    %v848 = vmul.f32 %v833, 1.442695
    %v849 = vpow.pop %v848
    %v850 = vadd.f32 %v835, 1.0
    %v851 = vadd.f32 %v837, 1.0
    %v852 = vadd.f32 %v839, 1.0
    %v853 = vadd.f32 %v841, 1.0
    %v854 = vadd.f32 %v843, 1.0
    %v855 = vadd.f32 %v845, 1.0
    %v856 = vadd.f32 %v847, 1.0
    %v857 = vadd.f32 %v849, 1.0
    %v858 = vrcp.pop %v850
    %v859 = vmul.f32 %v850, %v858
    %v860 = vsub.f32 1.0, %v859
    %v861 = vmul.f32 %v858, %v860
    %v862 = vadd.f32 %v858, %v861
    %vm863 = vweird.f32 %v850
    %vm864 = vweird.f32 %v858
    %vm865 = vmor %vm863, %vm864
    %v866 = vsel %vm865, %v858, %v862
    %v867 = vand.u32 2147483647, %v850
    %vm868 = vcmp.eq.f32.partialorder %v867, 8.507059e+37
    %v869 = vand.u32 %v850, 2147483648
    %v870 = vor.u32 1.1754944e-38, %v869
    %v871 = vsel %vm868, %v870, %v866
    %v872 = vmul.f32 1.0, %v871
    %v873 = vrcp.pop %v851
    %v874 = vmul.f32 %v851, %v873
    %v875 = vsub.f32 1.0, %v874
    %v876 = vmul.f32 %v873, %v875
    %v877 = vadd.f32 %v873, %v876
    %vm878 = vweird.f32 %v851
    %vm879 = vweird.f32 %v873
    %vm880 = vmor %vm878, %vm879
    %v881 = vsel %vm880, %v873, %v877
    %v882 = vand.u32 2147483647, %v851
    %vm883 = vcmp.eq.f32.partialorder %v882, 8.507059e+37
    %v884 = vand.u32 %v851, 2147483648
    %v885 = vor.u32 1.1754944e-38, %v884
    %v886 = vsel %vm883, %v885, %v881
    %v887 = vmul.f32 1.0, %v886
    %v888 = vrcp.pop %v852
    %v889 = vmul.f32 %v852, %v888
    %v890 = vsub.f32 1.0, %v889
    %v891 = vmul.f32 %v888, %v890
    %v892 = vadd.f32 %v888, %v891
    %vm893 = vweird.f32 %v852
    %vm894 = vweird.f32 %v888
    %vm895 = vmor %vm893, %vm894
    %v896 = vsel %vm895, %v888, %v892
    %v897 = vand.u32 2147483647, %v852
    %vm898 = vcmp.eq.f32.partialorder %v897, 8.507059e+37
    %v899 = vand.u32 %v852, 2147483648
    %v900 = vor.u32 1.1754944e-38, %v899
    %v901 = vsel %vm898, %v900, %v896
    %v902 = vmul.f32 1.0, %v901
    %v903 = vrcp.pop %v853
    %v904 = vmul.f32 %v853, %v903
    %v905 = vsub.f32 1.0, %v904
    %v906 = vmul.f32 %v903, %v905
    %v907 = vadd.f32 %v903, %v906
    %vm908 = vweird.f32 %v853
    %vm909 = vweird.f32 %v903
    %vm910 = vmor %vm908, %vm909
    %v911 = vsel %vm910, %v903, %v907
    %v912 = vand.u32 2147483647, %v853
    %vm913 = vcmp.eq.f32.partialorder %v912, 8.507059e+37
    %v914 = vand.u32 %v853, 2147483648
    %v915 = vor.u32 1.1754944e-38, %v914
    %v916 = vsel %vm913, %v915, %v911
    %v917 = vmul.f32 1.0, %v916
    %v918 = vrcp.pop %v854
    %v919 = vmul.f32 %v854, %v918
    %v920 = vsub.f32 1.0, %v919
    %v921 = vmul.f32 %v918, %v920
    %v922 = vadd.f32 %v918, %v921
    %vm923 = vweird.f32 %v854
    %vm924 = vweird.f32 %v918
    %vm925 = vmor %vm923, %vm924
    %v926 = vsel %vm925, %v918, %v922
    %v927 = vand.u32 2147483647, %v854
    %vm928 = vcmp.eq.f32.partialorder %v927, 8.507059e+37
    %v929 = vand.u32 %v854, 2147483648
    %v930 = vor.u32 1.1754944e-38, %v929
    %v931 = vsel %vm928, %v930, %v926
    %v932 = vmul.f32 1.0, %v931
    %v933 = vrcp.pop %v855
    %v934 = vmul.f32 %v855, %v933
    %v935 = vsub.f32 1.0, %v934
    %v936 = vmul.f32 %v933, %v935
    %v937 = vadd.f32 %v933, %v936
    %vm938 = vweird.f32 %v855
    %vm939 = vweird.f32 %v933
    %vm940 = vmor %vm938, %vm939
    %v941 = vsel %vm940, %v933, %v937
    %v942 = vand.u32 2147483647, %v855
    %vm943 = vcmp.eq.f32.partialorder %v942, 8.507059e+37
    %v944 = vand.u32 %v855, 2147483648
    %v945 = vor.u32 1.1754944e-38, %v944
    %v946 = vsel %vm943, %v945, %v941
    %v947 = vmul.f32 1.0, %v946
    %v948 = vrcp.pop %v856
    %v949 = vmul.f32 %v856, %v948
    %v950 = vsub.f32 1.0, %v949
    %v951 = vmul.f32 %v948, %v950
    %v952 = vadd.f32 %v948, %v951
    %vm953 = vweird.f32 %v856
    %vm954 = vweird.f32 %v948
    %vm955 = vmor %vm953, %vm954
    %v956 = vsel %vm955, %v948, %v952
    %v957 = vand.u32 2147483647, %v856
    %vm958 = vcmp.eq.f32.partialorder %v957, 8.507059e+37
    %v959 = vand.u32 %v856, 2147483648
    %v960 = vor.u32 1.1754944e-38, %v959
    %v961 = vsel %vm958, %v960, %v956
    %v962 = vmul.f32 1.0, %v961
    %v963 = vrcp.pop %v857
    %v964 = vmul.f32 %v857, %v963
    %v965 = vsub.f32 1.0, %v964
    %v966 = vmul.f32 %v963, %v965
    %v967 = vadd.f32 %v963, %v966
    %vm968 = vweird.f32 %v857
    %vm969 = vweird.f32 %v963
    %vm970 = vmor %vm968, %vm969
    %v971 = vsel %vm970, %v963, %v967
    %v972 = vand.u32 2147483647, %v857
    %vm973 = vcmp.eq.f32.partialorder %v972, 8.507059e+37
    %v974 = vand.u32 %v857, 2147483648
    %v975 = vor.u32 1.1754944e-38, %v974
    %v976 = vsel %vm973, %v975, %v971
    %v977 = vmul.f32 1.0, %v976
    %978 = vst [vmem:[#allocation11] sm:$0xff] %v872
    %979 = vst [vmem:[#allocation11 + $0x8] sm:$0xff] %v887
    %980 = vst [vmem:[#allocation11 + $0x10] sm:$0xff] %v902
    %981 = vst [vmem:[#allocation11 + $0x18] sm:$0xff] %v917
    %982 = vst [vmem:[#allocation11 + $0x20] sm:$0xff] %v932
    %983 = vst [vmem:[#allocation11 + $0x28] sm:$0xff] %v947
    %984 = vst [vmem:[#allocation11 + $0x30] sm:$0xff] %v962
    %985 = vst [vmem:[#allocation11 + $0x38] sm:$0xff] %v977
    // Predicated region
    $region38: #{tpu_custom_call.1} parent=1 // pred_check
      _
    $region39: #{tpu_custom_call.1} parent=1 // pred_check_branch
      %987 = sbr.rel (0) target = $region41
    $region40: #{tpu_custom_call.1} parent=1 // pred_region
      %989 = vsyncadd [#allocation5], 0
      %s991 = sshll.u32 [#allocation11], 4
      %s992 = int_to_ptr.vmem [resolvable:$true] %s991
      %s993 = sshll.u32 %s5, 4
      %s994 = int_to_ptr.hbm [resolvable:$true] %s993
      %996 = dma.vmem_to_hbm [thread:$0]  %s992, 1024, %s994, [#allocation5]
    $region41: #{tpu_custom_call.1} parent=1 // pred_fallthru
      _
    // Predicated region
    $region42: #{tpu_custom_call.1} parent=1 // pred_check
      _
    $region43: #{tpu_custom_call.1} parent=1 // pred_check_branch
      %998 = sbr.rel (0) target = $region45
    $region44: #{tpu_custom_call.1} parent=1 // pred_region
      %1000 = dma.done [#allocation5], 1024
    $region45: #{tpu_custom_call.1} parent=1 // pred_fallthru
      _
    %1001 = vsyncpa [#allocation4], 1
    %1002 = vsyncpa [#allocation5], 1
    %1003 = vsyncpa [#allocation6], 1
    %1004 = vsyncpa [#allocation8], 1

</llo_original>
